<compile_context>
chip_gen: v7x
topology: tpu7x:2x2x1
jax: 0.10.0
libtpu: 0.0.40
codegen_flags: <defaults>
</compile_context>

<pallas_src>
import math

import jax
import jax.numpy as jnp
from jax import lax
from jax.experimental import pallas as pl
from jax.experimental.pallas import tpu as pltpu

NUM_EXPERTS = 6
TOP_K = 3

_LANE = 128
_SUBLANE = 8
_X_BLOCK_BYTES = 4 * 1024 * 1024   # per-buffer x tile (Pallas double-buffers it)
_MAX_LANES = 2048                  # >=512-wide lane tiles keep HBM near roofline


def _pick_tile(dim, align, max_tile):
    """Largest multiple of `align` that divides `dim` and is <= max_tile.
    Falls back to the full dim (always a legal block size) when dim <= max_tile
    or no aligned divisor exists."""
    if dim <= max_tile or dim % align != 0:
        return dim
    t = (max_tile // align) * align
    while t >= align:
        if dim % t == 0:
            return t
        t -= align
    return dim


# --------------------------------------------------------------------------
# Kernel 1: pooling  (AdaptiveMaxPool2d(1) + AdaptiveAvgPool2d(1))
# --------------------------------------------------------------------------
def _make_pool_kernel(inv_hw):
    def pool_kernel(x_ref, pooled_ref, max_sc, sum_sc):
        k = pl.program_id(1)                      # spatial axis ("arbitrary", last)

        @pl.when(k == 0)
        def _():
            max_sc[...] = jnp.full(max_sc.shape, -jnp.inf, dtype=max_sc.dtype)
            sum_sc[...] = jnp.zeros(sum_sc.shape, dtype=sum_sc.dtype)

        x = x_ref[...].astype(jnp.float32)        # (TR, THW) upcast in-kernel
        max_sc[...] = jnp.maximum(max_sc[...], jnp.max(x, axis=1, keepdims=True))
        sum_sc[...] = sum_sc[...] + jnp.sum(x, axis=1, keepdims=True)

        @pl.when(k == pl.num_programs(1) - 1)
        def _():
            pooled_ref[...] = max_sc[...] + sum_sc[...] * inv_hw

    return pool_kernel


def _pooled(x_nchw):
    B, C, H, W = x_nchw.shape
    R, HW = B * C, H * W
    x2 = x_nchw.reshape(R, HW)                    # native dtype; free dim collapse
    itemsize = jnp.dtype(x2.dtype).itemsize

    thw = _pick_tile(HW, _LANE, _MAX_LANES)
    max_rows = max(_SUBLANE, _X_BLOCK_BYTES // max(1, thw * itemsize))
    tr = _pick_tile(R, _SUBLANE, max_rows)
    grid = (R // tr, HW // thw)

    cost = pl.CostEstimate(
        flops=2 * R * HW,                         # one max + one add per element
        transcendentals=0,
        bytes_accessed=R * HW * itemsize + R * 4,
    )

    pooled = pl.pallas_call(
        _make_pool_kernel(1.0 / float(HW)),
        out_shape=jax.ShapeDtypeStruct((R, 1), jnp.float32),
        grid=grid,
        in_specs=[pl.BlockSpec((tr, thw), lambda r, k: (r, k))],
        out_specs=pl.BlockSpec((tr, 1), lambda r, k: (r, 0)),
        scratch_shapes=[pltpu.VMEM((tr, 1), jnp.float32),
                        pltpu.VMEM((tr, 1), jnp.float32)],
        compiler_params=pltpu.CompilerParams(
            dimension_semantics=("parallel", "arbitrary"),
            vmem_limit_bytes=32 * 1024 * 1024,
        ),
        cost_estimate=cost,
    )(x2)
    return pooled.reshape(B, C)


# --------------------------------------------------------------------------
# Kernel 2: gate head (fc0/fc1, softplus, std-normalise, top-k, softmax)
# --------------------------------------------------------------------------
def gate_head_kernel(pooled_ref, w_ref, b_ref, out_ref):
    pooled = pooled_ref[...]                                  # (B, C) f32

    # Single fused matmul: fc1 occupies lanes [0, E), fc0 lanes [128, 128+E),
    # so both result slices sit on vreg-aligned lane offsets (free slices).
    y = jnp.dot(pooled, w_ref[...], preferred_element_type=jnp.float32) + b_ref[...]
    h = y[:, :NUM_EXPERTS]                                    # fc1 output (B, E)
    z = y[:, _LANE:_LANE + NUM_EXPERTS]                       # fc0 output (B, E)

    # LeakyReLU(0.2)
    h = jnp.where(h > 0, h, 0.2 * h)

    # Softplus (numerically stable)
    noise = jnp.log1p(jnp.exp(-jnp.abs(z))) + jnp.maximum(z, 0.0)

    E = NUM_EXPERTS
    mean = jnp.mean(noise, axis=1, keepdims=True)
    # torch.std default is unbiased (divide by n-1); rsqrt goes to the EUP.
    var = jnp.sum((noise - mean) ** 2, axis=1, keepdims=True) * (1.0 / (E - 1))
    norm_noise = (noise - mean) * lax.rsqrt(var)

    scores = h + norm_noise                                   # (B, E)

    # top-k selection mask (iterative argmax; ties -> lowest index, matching
    # torch.topk), all in 2-D vreg-friendly shapes.
    neg_inf = jnp.float32(-jnp.inf)
    idx = lax.broadcasted_iota(jnp.int32, scores.shape, 1)
    remaining = scores
    selected = jnp.zeros(scores.shape, dtype=jnp.bool_)
    for _ in range(TOP_K):
        m = jnp.max(remaining, axis=1, keepdims=True)
        is_max = remaining == m
        first = jnp.min(jnp.where(is_max, idx, E), axis=1, keepdims=True)
        pick = idx == first
        selected = jnp.logical_or(selected, pick)
        remaining = jnp.where(pick, neg_inf, remaining)

    # mask non-selected logits with -inf, softmax over experts
    masked = jnp.where(selected, h, neg_inf)
    mmax = jnp.max(masked, axis=1, keepdims=True)
    e = jnp.exp(masked - mmax)
    inv = pl.reciprocal(jnp.sum(e, axis=1, keepdims=True), approx=True)
    out_ref[...] = e * inv


def gate_network(x_nchw, w0, b0, w1, b1):
    """w0, w1 are PyTorch-layout (E, C); biases are (E,). Returns (B, E) f32."""
    B, C, H, W = x_nchw.shape
    E = w0.shape[0]
    assert E == NUM_EXPERTS and E <= _LANE

    pooled = _pooled(x_nchw)                                  # (B, C) f32

    # Pack fc1 (lanes 0:E) and fc0 (lanes 128:128+E) into one lane-aligned slab
    # so the head does a single weight DMA and a single MXU push.
    w_cat = jnp.zeros((C, 2 * _LANE), jnp.float32)
    w_cat = w_cat.at[:, :E].set(jnp.asarray(w1, jnp.float32).T)
    w_cat = w_cat.at[:, _LANE:_LANE + E].set(jnp.asarray(w0, jnp.float32).T)
    b_cat = jnp.zeros((1, 2 * _LANE), jnp.float32)
    b_cat = b_cat.at[:, :E].set(jnp.asarray(b1, jnp.float32)[None, :])
    b_cat = b_cat.at[:, _LANE:_LANE + E].set(jnp.asarray(b0, jnp.float32)[None, :])

    vmem = pl.BlockSpec(memory_space=pltpu.MemorySpace.VMEM)
    return pl.pallas_call(
        gate_head_kernel,
        out_shape=jax.ShapeDtypeStruct((B, E), jnp.float32),
        in_specs=[vmem, vmem, vmem],
        out_specs=vmem,
    )(pooled, w_cat, b_cat)


# --------------------------------------------------------------------------
# Pure-JAX reference mirroring the PyTorch forward
# --------------------------------------------------------------------------
def gate_network_ref(x_nchw, w0, b0, w1, b1):
    B, C, H, W = x_nchw.shape
    xf = x_nchw.reshape(B, C, H * W).astype(jnp.float32)
    pooled = jnp.max(xf, axis=-1) + jnp.mean(xf, axis=-1)
    h = pooled @ w1.T + b1
    h = jnp.where(h > 0, h, 0.2 * h)
    noise = jax.nn.softplus(pooled @ w0.T + b0)
    mean = jnp.mean(noise, axis=1, keepdims=True)
    std = jnp.std(noise, axis=1, ddof=1, keepdims=True)
    scores = h + (noise - mean) / std
    _, top_idx = lax.top_k(scores, TOP_K)
    mask = jnp.zeros_like(h).at[jnp.arange(B)[:, None], top_idx].set(1.0)
    masked = jnp.where(mask.astype(bool), h, -jnp.inf)
    return jax.nn.softmax(masked, axis=1)


if __name__ == "__main__":
    B, C, H, W = 2, 4, 16, 16          # C == input_size
    E = NUM_EXPERTS

    key = jax.random.PRNGKey(0)
    kx, k0w, k0b, k1b = jax.random.split(key, 4)

    # Deterministic parameter init (fc1.weight is zero, per init.zeros_).
    bound = 1.0 / math.sqrt(C)
    w0 = jax.random.uniform(k0w, (E, C), jnp.float32, -bound, bound)
    b0 = jax.random.uniform(k0b, (E,), jnp.float32, -bound, bound)
    w1 = jnp.zeros((E, C), jnp.float32)
    b1 = jax.random.uniform(k1b, (E,), jnp.float32, -bound, bound)

    x = jax.random.normal(kx, (B, C, H, W), jnp.float32)

    gate_fn = jax.jit(gate_network)    # fuse wrapper-side packing / reshapes
    out = jax.block_until_ready(gate_fn(x, w0, b0, w1, b1))
    ref = gate_network_ref(x, w0, b0, w1, b1)

    # sanity: matches reference, rows sum to 1, exactly TOP_K nonzero entries
    # (tolerance covers the approx-reciprocal / rsqrt EUP paths)
    assert out.shape == (B, E)
    assert jnp.allclose(out, ref, atol=2e-3, rtol=2e-3)
    assert jnp.allclose(jnp.sum(out, axis=1), 1.0, atol=2e-3)
    assert bool(jnp.all(jnp.sum(out > 0, axis=1) == TOP_K))

    print("KERNEL_OK")
</pallas_src>

<mosaic_0001>
module attributes {stable_mosaic.version = 11 : i64} {
  func.func @pool_kernel(%arg0: i32, %arg1: i32, %arg2: memref<8x256xf32, #tpu.memory_space<vmem>>, %arg3: memref<8x1xf32, #tpu.memory_space<vmem>>, %arg4: memref<8x1xf32, #tpu.memory_space<vmem>>, %arg5: memref<8x1xf32, #tpu.memory_space<vmem>>) attributes {dimension_semantics = [#tpu.dimension_semantics<parallel>, #tpu.dimension_semantics<arbitrary>], iteration_bounds = array<i64: 1, 1>, scalar_prefetch = 0 : i64, scratch_operands = 2 : i64, tpu.core_type = #tpu.core_type<tc>, window_params = [{transform_indices = @transform_0, window_bounds = array<i64: 8, 256>}, {transform_indices = @transform_1, window_bounds = array<i64: 8, 1>}]} {
    %c0_i32 = arith.constant 0 : i32
    %0 = arith.cmpi eq, %arg1, %c0_i32 : i32
    %1 = arith.extui %0 : i1 to i32
    %c0_i32_0 = arith.constant 0 : i32
    %2 = arith.cmpi ne, %1, %c0_i32_0 : i32
    scf.if %2 {
      %cst_13 = arith.constant 0xFF800000 : f32
      %17 = vector.broadcast %cst_13 : f32 to vector<8x1xf32>
      %c0_14 = arith.constant 0 : index
      %c0_15 = arith.constant 0 : index
      %18 = vector.load %arg4[%c0_14, %c0_15] : memref<8x1xf32, #tpu.memory_space<vmem>>, vector<8x1xf32>
      tpu.vector_store %arg4[%c0_14, %c0_15], %17 {strides = array<i32>} : memref<8x1xf32, #tpu.memory_space<vmem>>, vector<8x1xf32>,
      %cst_16 = arith.constant 0.000000e+00 : f32
      %19 = vector.broadcast %cst_16 : f32 to vector<8x1xf32>
      %c0_17 = arith.constant 0 : index
      %c0_18 = arith.constant 0 : index
      %20 = vector.load %arg5[%c0_17, %c0_18] : memref<8x1xf32, #tpu.memory_space<vmem>>, vector<8x1xf32>
      tpu.vector_store %arg5[%c0_17, %c0_18], %19 {strides = array<i32>} : memref<8x1xf32, #tpu.memory_space<vmem>>, vector<8x1xf32>,
    } else {
    }
    %c0 = arith.constant 0 : index
    %c0_1 = arith.constant 0 : index
    %3 = vector.load %arg2[%c0, %c0_1] : memref<8x256xf32, #tpu.memory_space<vmem>>, vector<8x256xf32>
    %c0_2 = arith.constant 0 : index
    %c0_3 = arith.constant 0 : index
    %4 = vector.load %arg4[%c0_2, %c0_3] : memref<8x1xf32, #tpu.memory_space<vmem>>, vector<8x1xf32>
    %cst = arith.constant dense<0xFF800000> : vector<8xf32>
    %5 = vector.multi_reduction <maximumf>, %3, %cst [1] : vector<8x256xf32> to vector<8xf32>
    %6 = vector.shape_cast %5 : vector<8xf32> to vector<8x1xf32>
    %7 = arith.maximumf %4, %6 : vector<8x1xf32>
    %c0_4 = arith.constant 0 : index
    %c0_5 = arith.constant 0 : index
    %8 = vector.load %arg4[%c0_4, %c0_5] : memref<8x1xf32, #tpu.memory_space<vmem>>, vector<8x1xf32>
    tpu.vector_store %arg4[%c0_4, %c0_5], %7 {strides = array<i32>} : memref<8x1xf32, #tpu.memory_space<vmem>>, vector<8x1xf32>,
    %c0_6 = arith.constant 0 : index
    %c0_7 = arith.constant 0 : index
    %9 = vector.load %arg5[%c0_6, %c0_7] : memref<8x1xf32, #tpu.memory_space<vmem>>, vector<8x1xf32>
    %cst_8 = arith.constant dense<0.000000e+00> : vector<8xf32>
    %10 = vector.multi_reduction <add>, %3, %cst_8 [1] : vector<8x256xf32> to vector<8xf32>
    %11 = vector.shape_cast %10 : vector<8xf32> to vector<8x1xf32>
    %12 = arith.addf %9, %11 : vector<8x1xf32>
    %c0_9 = arith.constant 0 : index
    %c0_10 = arith.constant 0 : index
    %13 = vector.load %arg5[%c0_9, %c0_10] : memref<8x1xf32, #tpu.memory_space<vmem>>, vector<8x1xf32>
    tpu.vector_store %arg5[%c0_9, %c0_10], %12 {strides = array<i32>} : memref<8x1xf32, #tpu.memory_space<vmem>>, vector<8x1xf32>,
    %c0_i32_11 = arith.constant 0 : i32
    %14 = arith.cmpi eq, %arg1, %c0_i32_11 : i32
    %15 = arith.extui %14 : i1 to i32
    %c0_i32_12 = arith.constant 0 : i32
    %16 = arith.cmpi ne, %15, %c0_i32_12 : i32
    scf.if %16 {
      %c0_13 = arith.constant 0 : index
      %c0_14 = arith.constant 0 : index
      %17 = vector.load %arg4[%c0_13, %c0_14] : memref<8x1xf32, #tpu.memory_space<vmem>>, vector<8x1xf32>
      %c0_15 = arith.constant 0 : index
      %c0_16 = arith.constant 0 : index
      %18 = vector.load %arg5[%c0_15, %c0_16] : memref<8x1xf32, #tpu.memory_space<vmem>>, vector<8x1xf32>
      %cst_17 = arith.constant 3.906250e-03 : f32
      %19 = vector.broadcast %cst_17 : f32 to vector<8x1xf32>
      %20 = arith.mulf %18, %19 : vector<8x1xf32>
      %21 = arith.addf %17, %20 : vector<8x1xf32>
      %c0_18 = arith.constant 0 : index
      %c0_19 = arith.constant 0 : index
      %22 = vector.load %arg3[%c0_18, %c0_19] : memref<8x1xf32, #tpu.memory_space<vmem>>, vector<8x1xf32>
      tpu.vector_store %arg3[%c0_18, %c0_19], %21 {strides = array<i32>} : memref<8x1xf32, #tpu.memory_space<vmem>>, vector<8x1xf32>,
    } else {
    }
    return
  }
  func.func @transform_0(%arg0: i32, %arg1: i32) -> (i32, i32) {
    %c0_i32 = arith.constant 0 : i32
    return %arg0, %arg1 : i32, i32
  }
  func.func @transform_1(%arg0: i32, %arg1: i32) -> (i32, i32) {
    %c0_i32 = arith.constant 0 : i32
    %c0_i32_0 = arith.constant 0 : i32
    return %arg0, %c0_i32 : i32, i32
  }
}

module attributes {stable_mosaic.version = 11 : i64} {
  func.func @gate_head_kernel(%arg0: memref<2x4xf32, #tpu.memory_space<vmem>>, %arg1: memref<4x256xf32, #tpu.memory_space<vmem>>, %arg2: memref<1x256xf32, #tpu.memory_space<vmem>>, %arg3: memref<2x6xf32, #tpu.memory_space<vmem>>) attributes {dimension_semantics = [], scalar_prefetch = 0 : i64, scratch_operands = 0 : i64, tpu.core_type = #tpu.core_type<tc>} {
    %c0 = arith.constant 0 : index
    %c0_0 = arith.constant 0 : index
    %0 = vector.load %arg0[%c0, %c0_0] : memref<2x4xf32, #tpu.memory_space<vmem>>, vector<2x4xf32>
    %c0_1 = arith.constant 0 : index
    %c0_2 = arith.constant 0 : index
    %1 = vector.load %arg1[%c0_1, %c0_2] : memref<4x256xf32, #tpu.memory_space<vmem>>, vector<4x256xf32>
    %cst = arith.constant dense<0.000000e+00> : vector<2x256xf32>
    %2 = tpu.matmul %0, %1, %cst {dimension_numbers = #tpu.dot_dimension_numbers<[1], [0], [0], [1], [0, 0, 1, 1], [], []>} : vector<2x4xf32>, vector<4x256xf32>, vector<2x256xf32> -> vector<2x256xf32>
    %c0_3 = arith.constant 0 : index
    %c0_4 = arith.constant 0 : index
    %3 = vector.load %arg2[%c0_3, %c0_4] : memref<1x256xf32, #tpu.memory_space<vmem>>, vector<1x256xf32>
    %4 = vector.broadcast %3 : vector<1x256xf32> to vector<2x256xf32>
    %5 = arith.addf %2, %4 : vector<2x256xf32>
    %6 = vector.extract_strided_slice %5 {offsets = [0, 0], sizes = [2, 6], strides = [1, 1]} : vector<2x256xf32> to vector<2x6xf32>
    %7 = vector.extract_strided_slice %5 {offsets = [0, 128], sizes = [2, 6], strides = [1, 1]} : vector<2x256xf32> to vector<2x6xf32>
    %cst_5 = arith.constant 0.000000e+00 : f32
    %8 = vector.broadcast %cst_5 : f32 to vector<2x6xf32>
    %9 = arith.cmpf ogt, %6, %8 : vector<2x6xf32>
    %cst_6 = arith.constant 2.000000e-01 : f32
    %10 = vector.broadcast %cst_6 : f32 to vector<2x6xf32>
    %11 = arith.mulf %10, %6 : vector<2x6xf32>
    %12 = arith.select %9, %6, %11 : vector<2x6xi1>, vector<2x6xf32>
    %13 = math.absf %7 : vector<2x6xf32>
    %cst_7 = arith.constant 0.000000e+00 : f32
    %14 = vector.broadcast %cst_7 : f32 to vector<2x6xf32>
    %15 = arith.subf %14, %13 : vector<2x6xf32>
    %16 = math.exp %15 : vector<2x6xf32>
    %17 = math.log1p %16 : vector<2x6xf32>
    %cst_8 = arith.constant 0.000000e+00 : f32
    %18 = vector.broadcast %cst_8 : f32 to vector<2x6xf32>
    %19 = arith.maximumf %7, %18 : vector<2x6xf32>
    %20 = arith.addf %17, %19 : vector<2x6xf32>
    %cst_9 = arith.constant dense<0.000000e+00> : vector<2xf32>
    %21 = vector.multi_reduction <add>, %20, %cst_9 [1] : vector<2x6xf32> to vector<2xf32>
    %22 = vector.shape_cast %21 : vector<2xf32> to vector<2x1xf32>
    %cst_10 = arith.constant 6.000000e+00 : f32
    %23 = vector.broadcast %cst_10 : f32 to vector<2x1xf32>
    %24 = arith.divf %22, %23 : vector<2x1xf32>
    %25 = vector.broadcast %24 : vector<2x1xf32> to vector<2x6xf32>
    %26 = arith.subf %20, %25 : vector<2x6xf32>
    %27 = arith.mulf %26, %26 : vector<2x6xf32>
    %cst_11 = arith.constant dense<0.000000e+00> : vector<2xf32>
    %28 = vector.multi_reduction <add>, %27, %cst_11 [1] : vector<2x6xf32> to vector<2xf32>
    %29 = vector.shape_cast %28 : vector<2xf32> to vector<2x1xf32>
    %cst_12 = arith.constant 2.000000e-01 : f32
    %30 = vector.broadcast %cst_12 : f32 to vector<2x1xf32>
    %31 = arith.mulf %29, %30 : vector<2x1xf32>
    %32 = vector.broadcast %24 : vector<2x1xf32> to vector<2x6xf32>
    %33 = arith.subf %20, %32 : vector<2x6xf32>
    %34 = math.rsqrt %31 : vector<2x1xf32>
    %35 = vector.broadcast %34 : vector<2x1xf32> to vector<2x6xf32>
    %36 = arith.mulf %33, %35 : vector<2x6xf32>
    %37 = arith.addf %12, %36 : vector<2x6xf32>
    %38 = tpu.iota {dimensions = array<i32: 1>} : vector<2x6xi32>
    %false = arith.constant false
    %39 = vector.broadcast %false : i1 to vector<2x6xi1>
    %cst_13 = arith.constant dense<0xFF800000> : vector<2xf32>
    %40 = vector.multi_reduction <maximumf>, %37, %cst_13 [1] : vector<2x6xf32> to vector<2xf32>
    %41 = vector.shape_cast %40 : vector<2xf32> to vector<2x1xf32>
    %42 = vector.broadcast %41 : vector<2x1xf32> to vector<2x6xf32>
    %43 = arith.cmpf oeq, %37, %42 : vector<2x6xf32>
    %c6_i32 = arith.constant 6 : i32
    %44 = vector.broadcast %c6_i32 : i32 to vector<2x6xi32>
    %45 = arith.select %43, %38, %44 : vector<2x6xi1>, vector<2x6xi32>
    %cst_14 = arith.constant dense<2147483647> : vector<2xi32>
    %46 = vector.multi_reduction <minsi>, %45, %cst_14 [1] : vector<2x6xi32> to vector<2xi32>
    %47 = vector.shape_cast %46 : vector<2xi32> to vector<2x1xi32>
    %48 = vector.broadcast %47 : vector<2x1xi32> to vector<2x6xi32>
    %49 = arith.cmpi eq, %38, %48 : vector<2x6xi32>
    %50 = arith.ori %39, %49 : vector<2x6xi1>
    %cst_15 = arith.constant 0xFF800000 : f32
    %51 = vector.broadcast %cst_15 : f32 to vector<2x6xf32>
    %52 = arith.select %49, %51, %37 : vector<2x6xi1>, vector<2x6xf32>
    %cst_16 = arith.constant dense<0xFF800000> : vector<2xf32>
    %53 = vector.multi_reduction <maximumf>, %52, %cst_16 [1] : vector<2x6xf32> to vector<2xf32>
    %54 = vector.shape_cast %53 : vector<2xf32> to vector<2x1xf32>
    %55 = vector.broadcast %54 : vector<2x1xf32> to vector<2x6xf32>
    %56 = arith.cmpf oeq, %52, %55 : vector<2x6xf32>
    %c6_i32_17 = arith.constant 6 : i32
    %57 = vector.broadcast %c6_i32_17 : i32 to vector<2x6xi32>
    %58 = arith.select %56, %38, %57 : vector<2x6xi1>, vector<2x6xi32>
    %cst_18 = arith.constant dense<2147483647> : vector<2xi32>
    %59 = vector.multi_reduction <minsi>, %58, %cst_18 [1] : vector<2x6xi32> to vector<2xi32>
    %60 = vector.shape_cast %59 : vector<2xi32> to vector<2x1xi32>
    %61 = vector.broadcast %60 : vector<2x1xi32> to vector<2x6xi32>
    %62 = arith.cmpi eq, %38, %61 : vector<2x6xi32>
    %63 = arith.ori %50, %62 : vector<2x6xi1>
    %cst_19 = arith.constant 0xFF800000 : f32
    %64 = vector.broadcast %cst_19 : f32 to vector<2x6xf32>
    %65 = arith.select %62, %64, %52 : vector<2x6xi1>, vector<2x6xf32>
    %cst_20 = arith.constant dense<0xFF800000> : vector<2xf32>
    %66 = vector.multi_reduction <maximumf>, %65, %cst_20 [1] : vector<2x6xf32> to vector<2xf32>
    %67 = vector.shape_cast %66 : vector<2xf32> to vector<2x1xf32>
    %68 = vector.broadcast %67 : vector<2x1xf32> to vector<2x6xf32>
    %69 = arith.cmpf oeq, %65, %68 : vector<2x6xf32>
    %c6_i32_21 = arith.constant 6 : i32
    %70 = vector.broadcast %c6_i32_21 : i32 to vector<2x6xi32>
    %71 = arith.select %69, %38, %70 : vector<2x6xi1>, vector<2x6xi32>
    %cst_22 = arith.constant dense<2147483647> : vector<2xi32>
    %72 = vector.multi_reduction <minsi>, %71, %cst_22 [1] : vector<2x6xi32> to vector<2xi32>
    %73 = vector.shape_cast %72 : vector<2xi32> to vector<2x1xi32>
    %74 = vector.broadcast %73 : vector<2x1xi32> to vector<2x6xi32>
    %75 = arith.cmpi eq, %38, %74 : vector<2x6xi32>
    %76 = arith.ori %63, %75 : vector<2x6xi1>
    %cst_23 = arith.constant 0xFF800000 : f32
    %77 = vector.broadcast %cst_23 : f32 to vector<2x6xf32>
    %78 = arith.select %76, %12, %77 : vector<2x6xi1>, vector<2x6xf32>
    %cst_24 = arith.constant dense<0xFF800000> : vector<2xf32>
    %79 = vector.multi_reduction <maximumf>, %78, %cst_24 [1] : vector<2x6xf32> to vector<2xf32>
    %80 = vector.shape_cast %79 : vector<2xf32> to vector<2x1xf32>
    %81 = vector.broadcast %80 : vector<2x1xf32> to vector<2x6xf32>
    %82 = arith.subf %78, %81 : vector<2x6xf32>
    %83 = math.exp %82 : vector<2x6xf32>
    %cst_25 = arith.constant dense<0.000000e+00> : vector<2xf32>
    %84 = vector.multi_reduction <add>, %83, %cst_25 [1] : vector<2x6xf32> to vector<2xf32>
    %85 = vector.shape_cast %84 : vector<2xf32> to vector<2x1xf32>
    %86 = tpu.reciprocal %85 {approx = true} : vector<2x1xf32> -> vector<2x1xf32>
    %87 = vector.broadcast %86 : vector<2x1xf32> to vector<2x6xf32>
    %88 = arith.mulf %83, %87 : vector<2x6xf32>
    %c0_26 = arith.constant 0 : index
    %c0_27 = arith.constant 0 : index
    %89 = vector.load %arg3[%c0_26, %c0_27] : memref<2x6xf32, #tpu.memory_space<vmem>>, vector<2x6xf32>
    tpu.vector_store %arg3[%c0_26, %c0_27], %88 {strides = array<i32>} : memref<2x6xf32, #tpu.memory_space<vmem>>, vector<2x6xf32>,
    return
  }
}

</mosaic_0001>

<llo_original>
// kernel: gate_network.2
$region0: #{gate_network.2}
  #allocation0 [shape = 'u32[]', space=smem, size = 0x4, offset = 0x4, fixed_abs, tag = 'smem constant byte address 0x4 - core index']
  #allocation1 [shape = 'u32[144,128]{1,0:T(1,128)}', space=vmem, size = 0x12000, scoped, tag = 'internal scratch']
  #allocation2 [shape = 'f32[8,1]{1,0:T(8,128)}', space=vmem, size = 0x1000, scoped, tag = 'scratch operand']
  #allocation3 [shape = 'f32[8,1]{1,0:T(8,128)}', space=vmem, size = 0x1000, scoped, tag = 'scratch operand']
  %s0 = inlined_call_operand.vmem [shape: f32[8,256], index: 0, kind: input, shape index: {}]
  %s1 = inlined_call_operand.vmem [shape: f32[8,1], index: 1, kind: output, shape index: {}]
  %s2 = sld [smem:[#allocation0]]
  $region22: #{gate_network.2} parent=0
    _
  %s4 = ssub.s32 1, %s2
  %s5 = scalar_select 0, %s4, %s2
  // Predicated region
  $region2: #{gate_network.2} parent=0 // pred_check
    _
  $region3: #{gate_network.2} parent=0 // pred_check_branch
    %7 = sbr.rel (0) target = $region5
  $region4: #{gate_network.2} parent=0 // pred_region
    _
  $region5: #{gate_network.2} parent=0 // pred_fallthru
    _
  %p8 = scmp.eq.s32.totalorder 0, 0
  // Predicated region
  $region6: #{gate_network.2} parent=0 // pred_check
    %p9 = pneg %p8
  $region7: #{gate_network.2} parent=0 // pred_check_branch
    %11 = sbr.rel (%p9) target = $region9
  $region8: #{gate_network.2} parent=0 // pred_region
    %vm12 = vcmask 7168
    %13 = vst.msk [vmem:[#allocation2] sm:$0xff] %vm12, -inf
    %14 = vst.msk [vmem:[#allocation3] sm:$0xff] %vm12, 0.0
  $region9: #{gate_network.2} parent=0 // pred_fallthru
    _
  %v15 = vld [vmem:[%s0] sm:$0xff]
  %v16 = vld [vmem:[%s0 + $0x8] sm:$0xff]
  %v17 = vld [vmem:[#allocation2] sm:$0xff]
  %v18 = vmax.f32 %v15, %v16
  %19 = vmax.xlane.f32.xlu0 %v18
  %v20 = vpop.xlane.xlu0 %19
  %v21 = vmax.f32 %v17, %v20
  %vm22 = vcmask 7168
  %23 = vst.msk [vmem:[#allocation2] sm:$0xff] %vm22, %v21
  %v24 = vld [vmem:[#allocation3] sm:$0xff]
  %v25 = vadd.f32 %v15, %v16
  %26 = vadd.xlane.f32.xlu0 %v25
  %v27 = vpop.xlane.xlu0 %26
  %v28 = vadd.f32 %v24, %v27
  %29 = vst.msk [vmem:[#allocation3] sm:$0xff] %vm22, %v28
  // Predicated region
  $region10: #{gate_network.2} parent=0 // pred_check
    %p30 = pneg %p8
  $region11: #{gate_network.2} parent=0 // pred_check_branch
    %32 = sbr.rel (%p30) target = $region13
  $region12: #{gate_network.2} parent=0 // pred_region
    %v33 = vld [vmem:[#allocation2] sm:$0xff]
    %v34 = vld [vmem:[#allocation3] sm:$0xff]
    %v35 = vmul.f32 %v34, 0.00390625
    %v36 = vadd.f32 %v33, %v35
    %37 = vst.msk [vmem:[%s1] sm:$0xff] %vm22, %v36
  $region13: #{gate_network.2} parent=0 // pred_fallthru
    _
  // Predicated region
  $region14: #{gate_network.2} parent=0 // pred_check
    _
  $region15: #{gate_network.2} parent=0 // pred_check_branch
    %39 = sbr.rel (0) target = $region17
  $region16: #{gate_network.2} parent=0 // pred_region
    _
  $region17: #{gate_network.2} parent=0 // pred_fallthru
    _
  // Predicated region
  $region18: #{gate_network.2} parent=0 // pred_check
    _
  $region19: #{gate_network.2} parent=0 // pred_check_branch
    %41 = sbr.rel (0) target = $region21
  $region20: #{gate_network.2} parent=0 // pred_region
    _
  $region21: #{gate_network.2} parent=0 // pred_fallthru
    _

// kernel: gate_network.3
$region0: #{gate_network.3}
  #allocation0 [shape = 'u32[]', space=smem, size = 0x4, offset = 0x4, fixed_abs, tag = 'smem constant byte address 0x4 - core index']
  #allocation1 [shape = 'u32[144,128]{1,0:T(1,128)}', space=vmem, size = 0x12000, scoped, tag = 'internal scratch']
  %s0 = inlined_call_operand.vmem [shape: f32[2,4], index: 0, kind: input, shape index: {}]
  %s1 = inlined_call_operand.vmem [shape: f32[4,256], index: 1, kind: input, shape index: {}]
  %s2 = inlined_call_operand.vmem [shape: f32[1,256], index: 2, kind: input, shape index: {}]
  %s3 = inlined_call_operand.hbm [shape: f32[2,6], index: 3, kind: output, shape index: {}]
  %s4 = sld [smem:[#allocation0]]
  $region22: #{gate_network.3} parent=0
    _
  %s6 = ssub.s32 1, %s4
  %s7 = scalar_select 0, %s6, %s4
  $region1: #{gate_network.3} parent=0
    #allocation2 [shape = 'u8[1024]{0}', space=vmem, size = 0x400, scoped, tag = 'output window, operand 0, single buffered']
    #allocation3 [shape = 's32[1]{0}', space=sflag, size = 0x4, scoped, tag = 'scoped memory for gate_network.3']
    %8 = vsyncpa [#allocation3], 0
    // Predicated region
    $region2: #{gate_network.3} parent=1 // pred_check
      _
    $region3: #{gate_network.3} parent=1 // pred_check_branch
      %10 = sbr.rel (0) target = $region5
    $region4: #{gate_network.3} parent=1 // pred_region
      _
    $region5: #{gate_network.3} parent=1 // pred_fallthru
      _
    // Predicated region
    $region6: #{gate_network.3} parent=1 // pred_check
      _
    $region7: #{gate_network.3} parent=1 // pred_check_branch
      %12 = sbr.rel (0) target = $region9
    $region8: #{gate_network.3} parent=1 // pred_region
      _
    $region9: #{gate_network.3} parent=1 // pred_fallthru
      _
    // Predicated region
    $region10: #{gate_network.3} parent=1 // pred_check
      _
    $region11: #{gate_network.3} parent=1 // pred_check_branch
      %14 = sbr.rel (0) target = $region13
    $region12: #{gate_network.3} parent=1 // pred_region
      _
    $region13: #{gate_network.3} parent=1 // pred_fallthru
      _
    %v15 = vld [vmem:[%s0] sm:$0x3]
    %v16 = vld [vmem:[%s1] sm:$0xff]
    %v17 = vld [vmem:[%s2] sm:$0x3]
    %v19 = vlaneseq
    %v20 = vshrl.u32 %v19, 7
    %v21 = vsub.s32 0, %v20
    %v22 = vrot.slane %v17, %v21
    %v23 = vlaneseq
    %v24 = vshrl.u32 %v23, 7
    %v25 = vsub.s32 1, %v24
    %v26 = vrot.slane %v17, %v25
    %v30 = vcombine.high %v16, %v16
    %vm31 = vcmask 31744
    %v33 = vsel %vm31, %v15, 0
    %vm35 = vcmask 1043456
    %v36 = vsel %vm35, %v16, 0
    %v38 = vsel %vm35, %v30, 0
    %40 = vmatprep.subr.mxu0 %v38
    %41 = vmatpush1.msra.mxu0 %v36
    %42 = vmatprep.subr.mxu0 0.0
    %43 = vmatpush1.msra.mxu0 0.0
    %44 = vmatprep.subr.mxu0 0.0
    %45 = vmatpush1.msra.mxu0 0.0
    %46 = vmatprep.subr.mxu0 0.0
    %47 = vmatpush1.msra.mxu0 0.0
    %48 = vmatprep.subr.mxu0 0.0
    %49 = vmatpush1.msra.mxu0 0.0
    %50 = vmatprep.subr.mxu0 0.0
    %51 = vmatpush1.msra.mxu0 0.0
    %52 = vmatprep.subr.mxu0 0.0
    %53 = vmatpush1.msra.mxu0 0.0
    %54 = vmatprep.subr.mxu0 0.0
    %55 = vmatpush1.msra.mxu0 0.0
    %56 = vmatprep.subr.mxu0 0.0
    %57 = vmatpush1.msra.mxu0 0.0
    %58 = vmatprep.subr.mxu0 0.0
    %59 = vmatpush1.msra.mxu0 0.0
    %60 = vmatprep.subr.mxu0 0.0
    %61 = vmatpush1.msra.mxu0 0.0
    %62 = vmatprep.subr.mxu0 0.0
    %63 = vmatpush1.msra.mxu0 0.0
    %64 = vmatprep.subr.mxu0 0.0
    %65 = vmatpush1.msra.mxu0 0.0
    %66 = vmatprep.subr.mxu0 0.0
    %67 = vmatpush1.msra.mxu0 0.0
    %68 = vmatprep.subr.mxu0 0.0
    %69 = vmatpush1.msra.mxu0 0.0
    %70 = vmatprep.subr.mxu0 0.0
    %71 = vmatpush1.msra.mxu0 0.0
    %72 = vmatprep.subr.mxu0 0.0
    %73 = vmatpush1.msra.mxu0 0.0
    %74 = vmatprep.subr.mxu0 0.0
    %75 = vmatpush1.msra.mxu0 0.0
    %76 = vmatprep.subr.mxu0 0.0
    %77 = vmatpush1.msra.mxu0 0.0
    %78 = vmatprep.subr.mxu0 0.0
    %79 = vmatpush1.msra.mxu0 0.0
    %80 = vmatprep.subr.mxu0 0.0
    %81 = vmatpush1.msra.mxu0 0.0
    %82 = vmatprep.subr.mxu0 0.0
    %83 = vmatpush1.msra.mxu0 0.0
    %84 = vmatprep.subr.mxu0 0.0
    %85 = vmatpush1.msra.mxu0 0.0
    %86 = vmatprep.subr.mxu0 0.0
    %87 = vmatpush1.msra.mxu0 0.0
    %88 = vmatprep.subr.mxu0 0.0
    %89 = vmatpush1.msra.mxu0 0.0
    %90 = vmatprep.subr.mxu0 0.0
    %91 = vmatpush1.msra.mxu0 0.0
    %92 = vmatprep.subr.mxu0 0.0
    %93 = vmatpush1.msra.mxu0 0.0
    %94 = vmatprep.subr.mxu0 0.0
    %95 = vmatpush1.msra.mxu0 0.0
    %96 = vmatprep.subr.mxu0 0.0
    %97 = vmatpush1.msra.mxu0 0.0
    %98 = vmatprep.subr.mxu0 0.0
    %99 = vmatpush1.msra.mxu0 0.0
    %100 = vmatprep.subr.mxu0 0.0
    %101 = vmatpush1.msra.mxu0 0.0
    %102 = vmatprep.subr.mxu0 0.0
    %103 = vmatpush1.msra.mxu0 0.0
    %104 = vmatprep.mubr.f32.mxu0 0.0
    %105 = vmatmul.mubr.f32.gmra.mrb[0].mxu0 %v33
    %v106 = vpop.f32.mrb[0].mxu0
    %v107 = vadd.f32 %v22, %v106
    %v108 = vpop.f32.mrb[0].mxu0
    %v109 = vadd.f32 %v26, %v108
    %110 = vdwg.mxu0
    %vm111 = vcmp.gt.f32.partialorder %v107, 0.0
    %v112 = vmul.f32 %v107, 0.2
    %v113 = vsel %vm111, %v107, %v112
    %v114 = vand.u32 2147483647, %v109
    %v115 = vsub.f32 0.0, %v114
    %v116 = vmul.f32 %v115, 1.442695
    %v117 = vpow.pop %v116
    %v118 = vadd.f32 %v117, 1.0
    %v119 = vlog2.pop %v118
    %v120 = vmul.f32 %v119, 0.6931472
    %v121 = vmul.f32 -0.5, %v117
    %v122 = vadd.f32 %v121, 1.0
    %v123 = vmul.f32 %v122, %v117
    %v124 = vand.u32 2147483647, %v117
    %vm125 = vcmp.lt.f32.partialorder %v124, 0.0004427343
    %v126 = vsel %vm125, %v123, %v120
    %v127 = vmax.f32 %v109, 0.0
    %v128 = vadd.f32 %v126, %v127
    %vm129 = vcmask 41984
    %v130 = vsel %vm129, %v128, 0.0
    %131 = vadd.xlane.f32.xlu0 %v130
    %v132 = vpop.xlane.xlu0 %131
    %v133 = vrcp.pop 6.0
    %v134 = vmul.f32 %v132, %v133
    %v135 = vsub.f32 %v128, %v134
    %v136 = vmul.f32 %v135, %v135
    %v137 = vsel %vm129, %v136, 0.0
    %138 = vadd.xlane.f32.xlu0 %v137
    %v139 = vpop.xlane.xlu0 %138
    %v140 = vmul.f32 %v139, 0.2
    %v141 = vrsqrt.pop %v140
    %v142 = vmul.f32 %v135, %v141
    %v143 = vadd.f32 %v113, %v142
    %v144 = vlaneseq
    %v145 = vand.u32 %v144, 127
    %v146 = vsel %vm129, %v143, -inf
    %147 = vmax.xlane.f32.xlu0 %v146
    %v148 = vpop.xlane.xlu0 %147
    %vm149 = vcmp.eq.f32.partialorder %v143, %v148
    %v150 = vsel %vm149, %v145, 6
    %v151 = vsel %vm129, %v150, 2147483647
    %v152 = vand.u32 %v151, 65535
    %v153 = vshra.s32 %v151, 16
    %v154 = vcvt.s32.f32 %v152
    %v155 = vcvt.s32.f32 %v153
    %156 = vmin.xlane.f32.xlu0 %v155
    %v157 = vpop.xlane.xlu0 %156
    %vm158 = vcmp.eq.f32.partialorder %v155, %v157
    %v159 = vsel %vm158, %v154, inf
    %160 = vmin.xlane.f32.xlu0 %v159
    %v161 = vpop.xlane.xlu0 %160
    %v162 = vcvt.f32.s32 %v161
    %v163 = vcvt.f32.s32 %v157
    %v164 = vshll.u32 %v163, 16
    %v165 = vadd.s32 %v164, %v162
    %vm166 = vcmp.eq.s32.totalorder %v145, %v165
    %v167 = vsel %vm166, -inf, %v143
    %v168 = vsel %vm129, %v167, -inf
    %169 = vmax.xlane.f32.xlu0 %v168
    %v170 = vpop.xlane.xlu0 %169
    %vm171 = vcmp.eq.f32.partialorder %v167, %v170
    %v172 = vsel %vm171, %v145, 6
    %v173 = vsel %vm129, %v172, 2147483647
    %v174 = vand.u32 %v173, 65535
    %v175 = vshra.s32 %v173, 16
    %v176 = vcvt.s32.f32 %v174
    %v177 = vcvt.s32.f32 %v175
    %178 = vmin.xlane.f32.xlu0 %v177
    %v179 = vpop.xlane.xlu0 %178
    %vm180 = vcmp.eq.f32.partialorder %v177, %v179
    %v181 = vsel %vm180, %v176, inf
    %182 = vmin.xlane.f32.xlu0 %v181
    %v183 = vpop.xlane.xlu0 %182
    %v184 = vcvt.f32.s32 %v183
    %v185 = vcvt.f32.s32 %v179
    %v186 = vshll.u32 %v185, 16
    %v187 = vadd.s32 %v186, %v184
    %vm188 = vcmp.eq.s32.totalorder %v145, %v187
    %vm189 = vmor %vm166, %vm188
    %v190 = vsel %vm188, -inf, %v167
    %v191 = vsel %vm129, %v190, -inf
    %192 = vmax.xlane.f32.xlu0 %v191
    %v193 = vpop.xlane.xlu0 %192
    %vm194 = vcmp.eq.f32.partialorder %v190, %v193
    %v195 = vsel %vm194, %v145, 6
    %v196 = vsel %vm129, %v195, 2147483647
    %v197 = vand.u32 %v196, 65535
    %v198 = vshra.s32 %v196, 16
    %v199 = vcvt.s32.f32 %v197
    %v200 = vcvt.s32.f32 %v198
    %201 = vmin.xlane.f32.xlu0 %v200
    %v202 = vpop.xlane.xlu0 %201
    %vm203 = vcmp.eq.f32.partialorder %v200, %v202
    %v204 = vsel %vm203, %v199, inf
    %205 = vmin.xlane.f32.xlu0 %v204
    %v206 = vpop.xlane.xlu0 %205
    %v207 = vcvt.f32.s32 %v206
    %v208 = vcvt.f32.s32 %v202
    %v209 = vshll.u32 %v208, 16
    %v210 = vadd.s32 %v209, %v207
    %vm211 = vcmp.eq.s32.totalorder %v145, %v210
    %vm212 = vmor %vm189, %vm211
    %v213 = vsel %vm212, %v113, -inf
    %v214 = vsel %vm129, %v213, -inf
    %215 = vmax.xlane.f32.xlu0 %v214
    %v216 = vpop.xlane.xlu0 %215
    %v217 = vsub.f32 %v213, %v216
    %v218 = vmul.f32 %v217, 1.442695
    %v219 = vpow.pop %v218
    %v220 = vsel %vm129, %v219, 0.0
    %221 = vadd.xlane.f32.xlu0 %v220
    %v222 = vpop.xlane.xlu0 %221
    %v223 = vrcp.pop %v222
    %v224 = vmul.f32 %v219, %v223
    %225 = vst.msk [vmem:[#allocation2] sm:$0x3] %vm129, %v224
    // Predicated region
    $region14: #{gate_network.3} parent=1 // pred_check
      _
    $region15: #{gate_network.3} parent=1 // pred_check_branch
      %227 = sbr.rel (0) target = $region17
    $region16: #{gate_network.3} parent=1 // pred_region
      %s229 = ssub.s32 32, 32
      %230 = vsyncadd [#allocation3], %s229
      %s232 = sshll.u32 [#allocation2], 4
      %s233 = int_to_ptr.vmem [resolvable:$true] %s232
      %235 = dma.vmem_to_hbm [thread:$0]  %s233, 32, %s3, [#allocation3]
    $region17: #{gate_network.3} parent=1 // pred_fallthru
      _
    // Predicated region
    $region18: #{gate_network.3} parent=1 // pred_check
      _
    $region19: #{gate_network.3} parent=1 // pred_check_branch
      %237 = sbr.rel (0) target = $region21
    $region20: #{gate_network.3} parent=1 // pred_region
      %238 = dma.done [#allocation3], 32
    $region21: #{gate_network.3} parent=1 // pred_fallthru
      _
    %239 = vsyncpa [#allocation3], 1

</llo_original>
